<compile_context>
chip_gen: v6e
topology: v6e:2x2x1
jax: 0.10.0
libtpu: 0.0.40
codegen_flags: <defaults>
</compile_context>

<pallas_src>
import collections
import functools

import numpy as np

import jax
import jax.numpy as jnp
from jax.experimental import pallas as pl
from jax.experimental.pallas import tpu as pltpu


def _round_up(x, m):
    return (x + m - 1) // m * m


# ---------------------------------------------------------------------------
# Pallas kernel: one (batch, frame-tile) step of the single-scale loss
# ---------------------------------------------------------------------------
def _sss_kernel(frames_ref, basis_ref, d_ref, s_ref, l_ref,
                *, T, TR, K, Kp, eps):
    """frames_ref : (2, TR, Np)   row 0 = x_true frames, row 1 = x_pred frames
       basis_ref  : (Np, 2*Kp)    windowed [cos | sin] real-DFT basis
       d_ref      : (1, 1, Kp)    per-batch, per-frequency sum of (St-Sp)^2
       s_ref      : (1, 1, Kp)    per-batch, per-frequency sum of (St+Sp)^2
       l_ref      : (1, 1, Kp)    per-batch, per-frequency sum |log St - log Sp|
    """
    t = pl.program_id(1)

    @pl.when(t == 0)
    def _init():
        d_ref[...] = jnp.zeros_like(d_ref)
        s_ref[...] = jnp.zeros_like(s_ref)
        l_ref[...] = jnp.zeros_like(l_ref)

    # Single MXU matmul: both signals (stacked rows) x both re/im halves.
    fr = frames_ref[...]
    fr = fr.reshape(2 * TR, fr.shape[-1])                       # (2*TR, Np)
    spec = jnp.dot(fr, basis_ref[...],
                   preferred_element_type=jnp.float32)          # (2*TR, 2*Kp)
    re = spec[:, :Kp]
    im = spec[:, Kp:]
    mag = jnp.sqrt(re * re + im * im) + eps                     # (2*TR, Kp)
    s_true = mag[:TR, :]
    s_pred = mag[TR:, :]

    # Validity mask: padded frame rows / padded frequency bins must not count.
    row = jax.lax.broadcasted_iota(jnp.int32, (TR, Kp), 0) + t * TR
    col = jax.lax.broadcasted_iota(jnp.int32, (TR, Kp), 1)
    valid = (row < T) & (col < K)

    diff = s_true - s_pred                          # exactly 0 at padded entries
    ssum = jnp.where(valid, s_true + s_pred, 0.0)   # needs explicit masking
    logd = jnp.abs(jnp.log(s_true) - jnp.log(s_pred))   # exactly 0 when padded

    d_ref[0] += jnp.sum(diff * diff, axis=0, keepdims=True)
    s_ref[0] += jnp.sum(ssum * ssum, axis=0, keepdims=True)
    l_ref[0] += jnp.sum(logd, axis=0, keepdims=True)


# ---------------------------------------------------------------------------
# Host-side (cached) basis construction
# ---------------------------------------------------------------------------
@functools.lru_cache(maxsize=None)
def _windowed_dft_basis(n_fft, n_pad, k_pad):
    """(n_pad, 2*k_pad) f32 basis [win*cos | win*sin], zero-padded."""
    K = n_fft // 2 + 1
    n = np.arange(n_fft, dtype=np.float64)
    k = np.arange(K, dtype=np.float64)
    ang = 2.0 * np.pi * np.outer(n, k) / n_fft
    # periodic Hann window; torchaudio `normalized=True` divides the
    # spectrogram by sqrt(sum(win^2)) -> fold both into the basis.
    win = 0.5 * (1.0 - np.cos(2.0 * np.pi * n / n_fft))
    win = win / np.sqrt(np.sum(win * win))
    basis = np.zeros((n_pad, 2 * k_pad), dtype=np.float32)
    basis[:n_fft, :K] = (win[:, None] * np.cos(ang)).astype(np.float32)
    basis[:n_fft, k_pad:k_pad + K] = (win[:, None] * np.sin(ang)).astype(np.float32)
    return jnp.asarray(basis)


# ---------------------------------------------------------------------------
# Single-scale spectral loss
# ---------------------------------------------------------------------------
@functools.partial(jax.jit, static_argnames=("n_fft", "alpha", "eps"))
def _sss_loss_impl(x_true, x_pred, basis, *, n_fft, alpha, eps):
    B, L = x_true.shape
    hop = n_fft                              # overlap = 0
    T = 1 + (L - n_fft) // hop               # frames (center=False)
    K = n_fft // 2 + 1
    n_pad = basis.shape[0]
    k_pad = basis.shape[1] // 2

    # Row tile: multiple of 8 sublanes; 256 keeps the per-step working set
    # inside the default scoped-VMEM limit on every generation (v7x has half
    # the VMEM of v5e/v6e).  TODO(synk): bump toward 512 on v6e for large T.
    TR = min(256, _round_up(T, 8))
    t_pad = _round_up(T, TR)
    num_t = t_pad // TR

    # Framing is a pure reshape (hop == n_fft, center=False); zero-pad frames
    # to (t_pad, n_pad): exact for the contraction dim, masked in-kernel for
    # the padded frame rows.
    def frame(x):
        f = x[:, :T * n_fft].reshape(B, T, n_fft).astype(jnp.float32)
        return jnp.pad(f, ((0, 0), (0, t_pad - T), (0, n_pad - n_fft)))

    # (B, 2, t_pad, n_pad) -> (2*B, t_pad, n_pad): row 2b = true, 2b+1 = pred.
    frames = jnp.stack([frame(x_true), frame(x_pred)], axis=1)
    frames = frames.reshape(2 * B, t_pad, n_pad)

    kernel = functools.partial(_sss_kernel, T=T, TR=TR, K=K, Kp=k_pad,
                               eps=float(eps))
    out_struct = jax.ShapeDtypeStruct((B, 1, k_pad), jnp.float32)
    d_cols, s_cols, l_cols = pl.pallas_call(
        kernel,
        out_shape=(out_struct, out_struct, out_struct),
        grid_spec=pltpu.PrefetchScalarGridSpec(
            num_scalar_prefetch=0,
            grid=(B, num_t),
            in_specs=[
                pl.BlockSpec((2, TR, n_pad), lambda b, t: (b, t, 0)),
                pl.BlockSpec((n_pad, 2 * k_pad), lambda b, t: (0, 0)),
            ],
            out_specs=(
                pl.BlockSpec((1, 1, k_pad), lambda b, t: (b, 0, 0)),
                pl.BlockSpec((1, 1, k_pad), lambda b, t: (b, 0, 0)),
                pl.BlockSpec((1, 1, k_pad), lambda b, t: (b, 0, 0)),
            ),
        ),
        compiler_params=pltpu.CompilerParams(
            dimension_semantics=("parallel", "arbitrary")),
    )(frames, basis)

    d_b = jnp.sum(d_cols[:, 0, :], axis=-1)          # (B,)  ||St - Sp||_F^2
    s_b = jnp.sum(s_cols[:, 0, :], axis=-1)          # (B,)  ||St + Sp||_F^2
    converge = jnp.mean(jnp.sqrt(d_b) / jnp.sqrt(s_b))
    log_term = jnp.sum(l_cols) / (B * T * K)         # mean over TRUE elements
    return converge + alpha * log_term


def sss_loss(x_true, x_pred, n_fft, alpha=1.0, eps=1e-7):
    """Single-scale spectral loss (torchaudio Spectrogram: power=1,
    normalized=True, center=False, hop_length=n_fft)."""
    n_fft = int(n_fft)
    K = n_fft // 2 + 1
    n_pad = _round_up(n_fft, 128)
    k_pad = _round_up(K, 128)
    basis = _windowed_dft_basis(n_fft, n_pad, k_pad)
    return _sss_loss_impl(x_true, x_pred, basis,
                          n_fft=n_fft, alpha=float(alpha), eps=float(eps))


# ---------------------------------------------------------------------------
# Random-scale spectral loss
# ---------------------------------------------------------------------------
def rss_loss(x_pred, x_true, *, fft_min, fft_max, n_scale,
             alpha=1.0, eps=1e-7, seed=0):
    """Mean of SSS losses at `n_scale` n_fft values drawn from [fft_min, fft_max)."""
    # Host-side RNG: n_fft fixes all shapes, so it must be a static Python int;
    # drawing it on-device would force a device->host sync per call.
    rng = np.random.default_rng(seed)
    n_ffts = [int(v) for v in rng.integers(fft_min, fft_max, size=n_scale)]
    # Deduplicate repeated scales -> one kernel launch per distinct n_fft.
    # TODO(synk): fuse all scales into a single pallas_call (scalar-prefetched
    # per-scale T/K metadata) so the audio frames are streamed from HBM once.
    counts = collections.Counter(n_ffts)
    total = 0.0
    for n_fft, c in counts.items():
        # matches PyTorch: loss_func(x_true, x_pred)
        total = total + c * sss_loss(x_true, x_pred, n_fft, alpha=alpha, eps=eps)
    return total / n_scale


if __name__ == "__main__":
    key = jax.random.PRNGKey(0)
    k_true, k_pred = jax.random.split(key)

    B, L = 2, 256                      # small synthetic audio batch
    x_true = jax.random.normal(k_true, (B, L), dtype=jnp.float32)
    x_pred = x_true + 0.1 * jax.random.normal(k_pred, (B, L), dtype=jnp.float32)

    loss = rss_loss(x_pred, x_true,
                    fft_min=16, fft_max=32, n_scale=3,
                    alpha=1.0, eps=1e-7, seed=0)
    loss = jax.block_until_ready(loss)
    assert jnp.isfinite(loss), "loss is not finite"
    print("KERNEL_OK")
</pallas_src>

<mosaic_0001>
module attributes {stable_mosaic.version = 11 : i64} {
  func.func @_sss_kernel(%arg0: i32, %arg1: i32, %arg2: memref<2x8x128xf32, #tpu.memory_space<vmem>>, %arg3: memref<128x256xf32, #tpu.memory_space<vmem>>, %arg4: memref<1x1x128xf32, #tpu.memory_space<vmem>>, %arg5: memref<1x1x128xf32, #tpu.memory_space<vmem>>, %arg6: memref<1x1x128xf32, #tpu.memory_space<vmem>>) attributes {dimension_semantics = [#tpu.dimension_semantics<parallel>, #tpu.dimension_semantics<arbitrary>], iteration_bounds = array<i64: 2, 1>, scalar_prefetch = 0 : i64, scratch_operands = 0 : i64, tpu.core_type = #tpu.core_type<tc>, window_params = [{transform_indices = @transform_0, window_bounds = array<i64: 2, 8, 128>}, {pipeline_mode = #tpu.pipeline_mode<synchronous>, transform_indices = @transform_1, window_bounds = array<i64: 128, 256>}, {transform_indices = @transform_2, window_bounds = array<i64: 1, 1, 128>}, {transform_indices = @transform_3, window_bounds = array<i64: 1, 1, 128>}, {transform_indices = @transform_4, window_bounds = array<i64: 1, 1, 128>}]} {
    %c0_i32 = arith.constant 0 : i32
    %0 = arith.cmpi eq, %arg1, %c0_i32 : i32
    %1 = arith.extui %0 : i1 to i32
    %c0_i32_0 = arith.constant 0 : i32
    %2 = arith.cmpi ne, %1, %c0_i32_0 : i32
    scf.if %2 {
      %cst_29 = arith.constant 0.000000e+00 : f32
      %61 = vector.broadcast %cst_29 : f32 to vector<1x1x128xf32>
      %c0_30 = arith.constant 0 : index
      %c0_31 = arith.constant 0 : index
      %c0_32 = arith.constant 0 : index
      %62 = vector.load %arg4[%c0_30, %c0_31, %c0_32] : memref<1x1x128xf32, #tpu.memory_space<vmem>>, vector<1x1x128xf32>
      tpu.vector_store %arg4[%c0_30, %c0_31, %c0_32], %61 {strides = array<i32>} : memref<1x1x128xf32, #tpu.memory_space<vmem>>, vector<1x1x128xf32>,
      %cst_33 = arith.constant 0.000000e+00 : f32
      %63 = vector.broadcast %cst_33 : f32 to vector<1x1x128xf32>
      %c0_34 = arith.constant 0 : index
      %c0_35 = arith.constant 0 : index
      %c0_36 = arith.constant 0 : index
      %64 = vector.load %arg5[%c0_34, %c0_35, %c0_36] : memref<1x1x128xf32, #tpu.memory_space<vmem>>, vector<1x1x128xf32>
      tpu.vector_store %arg5[%c0_34, %c0_35, %c0_36], %63 {strides = array<i32>} : memref<1x1x128xf32, #tpu.memory_space<vmem>>, vector<1x1x128xf32>,
      %cst_37 = arith.constant 0.000000e+00 : f32
      %65 = vector.broadcast %cst_37 : f32 to vector<1x1x128xf32>
      %c0_38 = arith.constant 0 : index
      %c0_39 = arith.constant 0 : index
      %c0_40 = arith.constant 0 : index
      %66 = vector.load %arg6[%c0_38, %c0_39, %c0_40] : memref<1x1x128xf32, #tpu.memory_space<vmem>>, vector<1x1x128xf32>
      tpu.vector_store %arg6[%c0_38, %c0_39, %c0_40], %65 {strides = array<i32>} : memref<1x1x128xf32, #tpu.memory_space<vmem>>, vector<1x1x128xf32>,
    } else {
    }
    %c0 = arith.constant 0 : index
    %c0_1 = arith.constant 0 : index
    %c0_2 = arith.constant 0 : index
    %3 = vector.load %arg2[%c0, %c0_1, %c0_2] : memref<2x8x128xf32, #tpu.memory_space<vmem>>, vector<2x8x128xf32>
    %4 = vector.shape_cast %3 : vector<2x8x128xf32> to vector<16x128xf32>
    %c0_3 = arith.constant 0 : index
    %c0_4 = arith.constant 0 : index
    %5 = vector.load %arg3[%c0_3, %c0_4] : memref<128x256xf32, #tpu.memory_space<vmem>>, vector<128x256xf32>
    %cst = arith.constant dense<0.000000e+00> : vector<16x256xf32>
    %6 = tpu.matmul %4, %5, %cst {dimension_numbers = #tpu.dot_dimension_numbers<[1], [0], [0], [1], [0, 0, 1, 1], [], []>} : vector<16x128xf32>, vector<128x256xf32>, vector<16x256xf32> -> vector<16x256xf32>
    %7 = vector.extract_strided_slice %6 {offsets = [0, 0], sizes = [16, 128], strides = [1, 1]} : vector<16x256xf32> to vector<16x128xf32>
    %8 = vector.extract_strided_slice %6 {offsets = [0, 128], sizes = [16, 128], strides = [1, 1]} : vector<16x256xf32> to vector<16x128xf32>
    %9 = arith.mulf %7, %7 : vector<16x128xf32>
    %10 = arith.mulf %8, %8 : vector<16x128xf32>
    %11 = arith.addf %9, %10 : vector<16x128xf32>
    %12 = math.sqrt %11 : vector<16x128xf32>
    %cst_5 = arith.constant 1.000000e-07 : f32
    %13 = vector.broadcast %cst_5 : f32 to vector<16x128xf32>
    %14 = arith.addf %12, %13 : vector<16x128xf32>
    %15 = vector.extract_strided_slice %14 {offsets = [0, 0], sizes = [8, 128], strides = [1, 1]} : vector<16x128xf32> to vector<8x128xf32>
    %16 = vector.extract_strided_slice %14 {offsets = [8, 0], sizes = [8, 128], strides = [1, 1]} : vector<16x128xf32> to vector<8x128xf32>
    %17 = tpu.iota {dimensions = array<i32: 0>} : vector<8x128xi32>
    %c8_i32 = arith.constant 8 : i32
    %18 = arith.muli %arg1, %c8_i32 : i32
    %19 = vector.broadcast %18 : i32 to vector<8x128xi32>
    %20 = arith.addi %17, %19 : vector<8x128xi32>
    %21 = tpu.iota {dimensions = array<i32: 1>} : vector<8x128xi32>
    %c8_i32_6 = arith.constant 8 : i32
    %22 = vector.broadcast %c8_i32_6 : i32 to vector<8x128xi32>
    %23 = arith.cmpi slt, %20, %22 : vector<8x128xi32>
    %c15_i32 = arith.constant 15 : i32
    %24 = vector.broadcast %c15_i32 : i32 to vector<8x128xi32>
    %25 = arith.cmpi slt, %21, %24 : vector<8x128xi32>
    %26 = arith.andi %23, %25 : vector<8x128xi1>
    %27 = arith.subf %15, %16 : vector<8x128xf32>
    %28 = arith.addf %15, %16 : vector<8x128xf32>
    %cst_7 = arith.constant 0.000000e+00 : f32
    %29 = vector.broadcast %cst_7 : f32 to vector<8x128xf32>
    %30 = arith.select %26, %28, %29 : vector<8x128xi1>, vector<8x128xf32>
    %31 = math.log %15 : vector<8x128xf32>
    %32 = math.log %16 : vector<8x128xf32>
    %33 = arith.subf %31, %32 : vector<8x128xf32>
    %34 = math.absf %33 : vector<8x128xf32>
    %c0_8 = arith.constant 0 : index
    %c0_9 = arith.constant 0 : index
    %c0_10 = arith.constant 0 : index
    %35 = vector.load %arg4[%c0_8, %c0_9, %c0_10] : memref<1x1x128xf32, #tpu.memory_space<vmem>>, vector<1x1x128xf32>
    %36 = vector.shape_cast %35 : vector<1x1x128xf32> to vector<1x128xf32>
    %37 = arith.mulf %27, %27 : vector<8x128xf32>
    %cst_11 = arith.constant dense<0.000000e+00> : vector<128xf32>
    %38 = vector.multi_reduction <add>, %37, %cst_11 [0] : vector<8x128xf32> to vector<128xf32>
    %39 = vector.shape_cast %38 : vector<128xf32> to vector<1x128xf32>
    %40 = arith.addf %36, %39 : vector<1x128xf32>
    %c0_12 = arith.constant 0 : index
    %c0_13 = arith.constant 0 : index
    %c0_14 = arith.constant 0 : index
    %41 = vector.load %arg4[%c0_12, %c0_13, %c0_14] : memref<1x1x128xf32, #tpu.memory_space<vmem>>, vector<1x1x128xf32>
    %42 = vector.shape_cast %41 : vector<1x1x128xf32> to vector<1x128xf32>
    %43 = vector.shape_cast %40 : vector<1x128xf32> to vector<1x1x128xf32>
    tpu.vector_store %arg4[%c0_12, %c0_13, %c0_14], %43 {strides = array<i32>} : memref<1x1x128xf32, #tpu.memory_space<vmem>>, vector<1x1x128xf32>,
    %c0_15 = arith.constant 0 : index
    %c0_16 = arith.constant 0 : index
    %c0_17 = arith.constant 0 : index
    %44 = vector.load %arg5[%c0_15, %c0_16, %c0_17] : memref<1x1x128xf32, #tpu.memory_space<vmem>>, vector<1x1x128xf32>
    %45 = vector.shape_cast %44 : vector<1x1x128xf32> to vector<1x128xf32>
    %46 = arith.mulf %30, %30 : vector<8x128xf32>
    %cst_18 = arith.constant dense<0.000000e+00> : vector<128xf32>
    %47 = vector.multi_reduction <add>, %46, %cst_18 [0] : vector<8x128xf32> to vector<128xf32>
    %48 = vector.shape_cast %47 : vector<128xf32> to vector<1x128xf32>
    %49 = arith.addf %45, %48 : vector<1x128xf32>
    %c0_19 = arith.constant 0 : index
    %c0_20 = arith.constant 0 : index
    %c0_21 = arith.constant 0 : index
    %50 = vector.load %arg5[%c0_19, %c0_20, %c0_21] : memref<1x1x128xf32, #tpu.memory_space<vmem>>, vector<1x1x128xf32>
    %51 = vector.shape_cast %50 : vector<1x1x128xf32> to vector<1x128xf32>
    %52 = vector.shape_cast %49 : vector<1x128xf32> to vector<1x1x128xf32>
    tpu.vector_store %arg5[%c0_19, %c0_20, %c0_21], %52 {strides = array<i32>} : memref<1x1x128xf32, #tpu.memory_space<vmem>>, vector<1x1x128xf32>,
    %c0_22 = arith.constant 0 : index
    %c0_23 = arith.constant 0 : index
    %c0_24 = arith.constant 0 : index
    %53 = vector.load %arg6[%c0_22, %c0_23, %c0_24] : memref<1x1x128xf32, #tpu.memory_space<vmem>>, vector<1x1x128xf32>
    %54 = vector.shape_cast %53 : vector<1x1x128xf32> to vector<1x128xf32>
    %cst_25 = arith.constant dense<0.000000e+00> : vector<128xf32>
    %55 = vector.multi_reduction <add>, %34, %cst_25 [0] : vector<8x128xf32> to vector<128xf32>
    %56 = vector.shape_cast %55 : vector<128xf32> to vector<1x128xf32>
    %57 = arith.addf %54, %56 : vector<1x128xf32>
    %c0_26 = arith.constant 0 : index
    %c0_27 = arith.constant 0 : index
    %c0_28 = arith.constant 0 : index
    %58 = vector.load %arg6[%c0_26, %c0_27, %c0_28] : memref<1x1x128xf32, #tpu.memory_space<vmem>>, vector<1x1x128xf32>
    %59 = vector.shape_cast %58 : vector<1x1x128xf32> to vector<1x128xf32>
    %60 = vector.shape_cast %57 : vector<1x128xf32> to vector<1x1x128xf32>
    tpu.vector_store %arg6[%c0_26, %c0_27, %c0_28], %60 {strides = array<i32>} : memref<1x1x128xf32, #tpu.memory_space<vmem>>, vector<1x1x128xf32>,
    return
  }
  func.func @transform_0(%arg0: i32, %arg1: i32) -> (i32, i32, i32) {
    %c0_i32 = arith.constant 0 : i32
    %c0_i32_0 = arith.constant 0 : i32
    return %arg0, %arg1, %c0_i32 : i32, i32, i32
  }
  func.func @transform_1(%arg0: i32, %arg1: i32) -> (i32, i32) {
    %c0_i32 = arith.constant 0 : i32
    %c0_i32_0 = arith.constant 0 : i32
    %c0_i32_1 = arith.constant 0 : i32
    return %c0_i32, %c0_i32_0 : i32, i32
  }
  func.func @transform_2(%arg0: i32, %arg1: i32) -> (i32, i32, i32) {
    %c0_i32 = arith.constant 0 : i32
    %c0_i32_0 = arith.constant 0 : i32
    %c0_i32_1 = arith.constant 0 : i32
    return %arg0, %c0_i32, %c0_i32_0 : i32, i32, i32
  }
  func.func @transform_3(%arg0: i32, %arg1: i32) -> (i32, i32, i32) {
    %c0_i32 = arith.constant 0 : i32
    %c0_i32_0 = arith.constant 0 : i32
    %c0_i32_1 = arith.constant 0 : i32
    return %arg0, %c0_i32, %c0_i32_0 : i32, i32, i32
  }
  func.func @transform_4(%arg0: i32, %arg1: i32) -> (i32, i32, i32) {
    %c0_i32 = arith.constant 0 : i32
    %c0_i32_0 = arith.constant 0 : i32
    %c0_i32_1 = arith.constant 0 : i32
    return %arg0, %c0_i32, %c0_i32_0 : i32, i32, i32
  }
}

</mosaic_0001>

<llo_original>
// kernel: _sss_loss_impl.1
$region0: #{_sss_loss_impl.1}
  #allocation0 [shape = 'u32[]', space=smem, size = 0x4, offset = 0x4, fixed_abs, tag = 'smem constant byte address 0x4 - core index']
  #allocation1 [shape = 'u32[144,128]{1,0:T(1,128)}', space=vmem, size = 0x12000, scoped, tag = 'internal scratch']
  %s0 = inlined_call_operand.vmem [shape: f32[4,8,128], index: 0, kind: input, shape index: {}]
  %s1 = inlined_call_operand.hbm [shape: f32[128,256], index: 1, kind: input, shape index: {}]
  %s2 = inlined_call_operand.vmem [shape: f32[2,1,128], index: 2, kind: output, shape index: {0}]
  %s3 = inlined_call_operand.vmem [shape: f32[2,1,128], index: 3, kind: output, shape index: {1}]
  %s4 = inlined_call_operand.vmem [shape: f32[2,1,128], index: 4, kind: output, shape index: {2}]
  %5 = xla_tuple %s2, %s3, %s4
  %s6 = sld [smem:[#allocation0]]
  $region65: #{_sss_loss_impl.1} parent=0
    _
  %s8 = ssub.s32 1, %s6
  %s9 = scalar_select 0, %s8, %s6
  $region1: #{_sss_loss_impl.1} parent=0
    #allocation2 [shape = 'u8[131072]{0}', space=vmem, size = 0x20000, scoped, tag = 'input window, operand 1, single buffered']
    #allocation3 [shape = 's32[2]{0}', space=sflag, size = 0x8, scoped, tag = 'scoped memory for _sss_loss_impl.1']
    %10 = vsyncpa [#allocation3], 0
    loop: start=0, step=1, limit=4
    $region2: #{_sss_loss_impl.1} parent=1 // loop_pre_header
      _
    $region3: #{_sss_loss_impl.1} parent=1 // loop_header
      %s12 = sphi 0, %s16
      %p13 = scmp.ge.s32.totalorder %s12, 4
      %s19 = sphi 0, %s31
      %s20 = sphi 0, %s27
      %s21 = sphi 0, %s19
      %s22 = sphi 0, %s20
      %s23 = sphi 0, %s21
      %s24 = sphi 0, %s22
      %s36 = sphi 0, %s38
      %s39 = sphi 0, %s36
      %s40 = sphi 0, %s39
      %s56 = sphi 0, %s40
      %s60 = sphi 0, %s60
      %s62 = sphi 0, %s60
      %s63 = sphi 0, %s62
      %s77 = sphi 0, %s63
      %s83 = sphi 0, %s85
      %s86 = sphi 0, %s83
      %s87 = sphi 0, %s86
      %s103 = sphi 0, %s87
      %s109 = sphi 0, %s111
      %s112 = sphi 0, %s109
      %s113 = sphi 0, %s112
      %s129 = sphi 0, %s113
      %s135 = sphi 0, %s137
      %s138 = sphi 0, %s135
      %s139 = sphi 0, %s138
      %s155 = sphi 0, %s139
    $region4: #{_sss_loss_impl.1} parent=1 // loop_header_branch
      %15 = sbr.rel (%p13) target = $region8
    $region5: #{_sss_loss_impl.1} parent=1 // loop_body
      %s17 = ssub.s32 %s12, 1
      %s18 = ssub.s32 %s12, 2
      %s25 = sadd.s32 1, %s20
      %p26 = scmp.ge.s32.totalorder %s25, 1
      %s27 = scalar_select %p26, 0, %s25
      %s28 = sadd.s32 1, %s19
      %s29 = scalar_select %p26, %s28, %s19
      %p30 = scmp.ge.s32.totalorder %s29, 2
      %s31 = scalar_select %p30, 0, %s29
      %s32 = ssub.s32 %s19, %s31
      %s33 = ssub.s32 %s20, %s27
      %s34 = sor.u32 %s32, %s33
      %p35 = scmp.eq.s32.totalorder %s34, 0
      %s37 = sadd.s32 %s36, 1
      %s38 = scalar_select %p35, %s36, %s37
      %p41 = pneg %p35
      %p42 = scmp.eq.s32.totalorder %s12, 1
      %p43 = por %p41, %p42
      %p44 = scmp.ne.s32.totalorder %s36, %s39
      %p45 = scmp.eq.s32.totalorder %s12, 0
      %p46 = por %p44, %p45
      %p47 = scmp.ne.s32.totalorder %s36, %s39
      %p48 = scmp.eq.s32.totalorder %s17, 1
      %p49 = por %p47, %p48
      %p50 = scmp.ne.s32.totalorder %s39, %s40
      %p51 = scmp.eq.s32.totalorder %s17, 0
      %p52 = por %p50, %p51
      %p53 = scmp.ne.s32.totalorder %s39, %s40
      %p54 = scmp.eq.s32.totalorder %s18, 1
      %p55 = por %p53, %p54
      %p57 = scmp.ne.s32.totalorder %s40, %s56
      %p58 = scmp.eq.s32.totalorder %s18, 0
      %p59 = por %p57, %p58
      %s61 = sadd.s32 %s60, 1
      %p64 = scmp.eq.s32.totalorder %s12, 1
      %p65 = scmp.ne.s32.totalorder %s60, %s62
      %p66 = scmp.eq.s32.totalorder %s12, 0
      %p67 = por %p65, %p66
      %p68 = scmp.ne.s32.totalorder %s60, %s62
      %p69 = scmp.eq.s32.totalorder %s17, 1
      %p70 = por %p68, %p69
      %p71 = scmp.ne.s32.totalorder %s62, %s63
      %p72 = scmp.eq.s32.totalorder %s17, 0
      %p73 = por %p71, %p72
      %p74 = scmp.ne.s32.totalorder %s62, %s63
      %p75 = scmp.eq.s32.totalorder %s18, 1
      %p76 = por %p74, %p75
      %p78 = scmp.ne.s32.totalorder %s63, %s77
      %p79 = scmp.eq.s32.totalorder %s18, 0
      %p80 = por %p78, %p79
      %s81 = ssub.s32 %s19, %s31
      %p82 = scmp.eq.s32.totalorder %s81, 0
      %s84 = sadd.s32 %s83, 1
      %s85 = scalar_select %p82, %s83, %s84
      %p88 = pneg %p82
      %p89 = scmp.eq.s32.totalorder %s12, 1
      %p90 = por %p88, %p89
      %p91 = scmp.ne.s32.totalorder %s83, %s86
      %p92 = scmp.eq.s32.totalorder %s12, 0
      %p93 = por %p91, %p92
      %p94 = scmp.ne.s32.totalorder %s83, %s86
      %p95 = scmp.eq.s32.totalorder %s17, 1
      %p96 = por %p94, %p95
      %p97 = scmp.ne.s32.totalorder %s86, %s87
      %p98 = scmp.eq.s32.totalorder %s17, 0
      %p99 = por %p97, %p98
      %p100 = scmp.ne.s32.totalorder %s86, %s87
      %p101 = scmp.eq.s32.totalorder %s18, 1
      %p102 = por %p100, %p101
      %p104 = scmp.ne.s32.totalorder %s87, %s103
      %p105 = scmp.eq.s32.totalorder %s18, 0
      %p106 = por %p104, %p105
      %s107 = ssub.s32 %s19, %s31
      %p108 = scmp.eq.s32.totalorder %s107, 0
      %s110 = sadd.s32 %s109, 1
      %s111 = scalar_select %p108, %s109, %s110
      %p114 = pneg %p108
      %p115 = scmp.eq.s32.totalorder %s12, 1
      %p116 = por %p114, %p115
      %p117 = scmp.ne.s32.totalorder %s109, %s112
      %p118 = scmp.eq.s32.totalorder %s12, 0
      %p119 = por %p117, %p118
      %p120 = scmp.ne.s32.totalorder %s109, %s112
      %p121 = scmp.eq.s32.totalorder %s17, 1
      %p122 = por %p120, %p121
      %p123 = scmp.ne.s32.totalorder %s112, %s113
      %p124 = scmp.eq.s32.totalorder %s17, 0
      %p125 = por %p123, %p124
      %p126 = scmp.ne.s32.totalorder %s112, %s113
      %p127 = scmp.eq.s32.totalorder %s18, 1
      %p128 = por %p126, %p127
      %p130 = scmp.ne.s32.totalorder %s113, %s129
      %p131 = scmp.eq.s32.totalorder %s18, 0
      %p132 = por %p130, %p131
      %s133 = ssub.s32 %s19, %s31
      %p134 = scmp.eq.s32.totalorder %s133, 0
      %s136 = sadd.s32 %s135, 1
      %s137 = scalar_select %p134, %s135, %s136
      %p140 = pneg %p134
      %p141 = scmp.eq.s32.totalorder %s12, 1
      %p142 = por %p140, %p141
      %p143 = scmp.ne.s32.totalorder %s135, %s138
      %p144 = scmp.eq.s32.totalorder %s12, 0
      %p145 = por %p143, %p144
      %p146 = scmp.ne.s32.totalorder %s135, %s138
      %p147 = scmp.eq.s32.totalorder %s17, 1
      %p148 = por %p146, %p147
      %p149 = scmp.ne.s32.totalorder %s138, %s139
      %p150 = scmp.eq.s32.totalorder %s17, 0
      %p151 = por %p149, %p150
      %p152 = scmp.ne.s32.totalorder %s138, %s139
      %p153 = scmp.eq.s32.totalorder %s18, 1
      %p154 = por %p152, %p153
      %p156 = scmp.ne.s32.totalorder %s139, %s155
      %p157 = scmp.eq.s32.totalorder %s18, 0
      %p158 = por %p156, %p157
      %p159 = scmp.le.s32.totalorder 1, %s12
      %p160 = scmp.lt.s32.totalorder %s12, 3
      %p161 = pnand %p159, %p160
      %p162 = pneg %p161
      // Predicated region
      $region9: #{_sss_loss_impl.1} parent=5 // pred_check
        _
      $region10: #{_sss_loss_impl.1} parent=5 // pred_check_branch
        %164 = sbr.rel (%p161) target = $region12
      $region11: #{_sss_loss_impl.1} parent=5 // pred_region
        %s165 = ssub.s32 %s12, 1
        // Predicated region
        $region13: #{_sss_loss_impl.1} parent=11 // pred_check
          %p166 = pneg %p73
        $region14: #{_sss_loss_impl.1} parent=11 // pred_check_branch
          %168 = sbr.rel (%p166) target = $region16
        $region15: #{_sss_loss_impl.1} parent=11 // pred_region
          %s170 = ssub.s32 4096, 4096
          %171 = vsyncadd [#allocation3], %s170
          %s172 = sshll.u32 [#allocation2], 4
          %s173 = int_to_ptr.vmem [resolvable:$true] %s172
          %178 = dma.hbm_to_vmem [thread:$0]  %s1, 4096, %s173, [#allocation3], 256, 256, 16
        $region16: #{_sss_loss_impl.1} parent=11 // pred_fallthru
          _
      $region12: #{_sss_loss_impl.1} parent=5 // pred_fallthru
        _
      %p179 = scmp.lt.s32.totalorder %s12, 2
      // Predicated region
      $region17: #{_sss_loss_impl.1} parent=5 // pred_check
        %p180 = pneg %p179
      $region18: #{_sss_loss_impl.1} parent=5 // pred_check_branch
        %182 = sbr.rel (%p180) target = $region20
      $region19: #{_sss_loss_impl.1} parent=5 // pred_region
        // Predicated region
        $region21: #{_sss_loss_impl.1} parent=19 // pred_check
          %p183 = pneg %p46
        $region22: #{_sss_loss_impl.1} parent=19 // pred_check_branch
          %185 = sbr.rel (%p183) target = $region24
        $region23: #{_sss_loss_impl.1} parent=19 // pred_region
          %s186 = smul.u32 2, %s19
          %p187 = scmp.lt.s32.totalorder %s186, 3
          %s188 = scalar_select %p187, %s186, 3
          %p189 = scmp.lt.s32.totalorder %s20, 0
          %s190 = scalar_select %p189, %s20, 0
          %s191 = sadd.s32 %s190, %s188
          %s192 = smul.addr %s191, 8
          %s193 = scalar_lea.vmem %s0, %s192
          %s194 = smul.u32 2, %s19
        $region24: #{_sss_loss_impl.1} parent=19 // pred_fallthru
          _
      $region20: #{_sss_loss_impl.1} parent=5 // pred_fallthru
        _
      %p195 = scmp.le.s32.totalorder 1, %s12
      %p196 = scmp.lt.s32.totalorder %s12, 3
      %p197 = pnand %p195, %p196
      %p198 = pneg %p197
      // Predicated region
      $region25: #{_sss_loss_impl.1} parent=5 // pred_check
        _
      $region26: #{_sss_loss_impl.1} parent=5 // pred_check_branch
        %200 = sbr.rel (%p197) target = $region28
      $region27: #{_sss_loss_impl.1} parent=5 // pred_region
        %s201 = ssub.s32 %s12, 1
        // Predicated region
        $region29: #{_sss_loss_impl.1} parent=27 // pred_check
          %p202 = pneg %p73
        $region30: #{_sss_loss_impl.1} parent=27 // pred_check_branch
          %204 = sbr.rel (%p202) target = $region32
        $region31: #{_sss_loss_impl.1} parent=27 // pred_region
          %205 = dma.done [#allocation3], 4096
        $region32: #{_sss_loss_impl.1} parent=27 // pred_fallthru
          _
        %s206 = smul.u32 2, %s21
        %p207 = scmp.lt.s32.totalorder %s206, 3
        %s208 = scalar_select %p207, %s206, 3
        %p209 = scmp.lt.s32.totalorder %s22, 0
        %s210 = scalar_select %p209, %s22, 0
        %s211 = sadd.s32 %s210, %s208
        %s212 = smul.addr %s211, 8
        %s213 = scalar_lea.vmem %s0, %s212
        %p214 = pneg %p52
        %p215 = pneg %p49
        %p216 = pneg %p73
        %p217 = pneg %p70
        %p218 = pneg %p99
        %p219 = pneg %p96
        %p220 = scmp.lt.s32.totalorder %s21, 1
        %s221 = scalar_select %p220, %s21, 1
        %s222 = scalar_lea.vmem %s2, %s221
        %p223 = pneg %p125
        %p224 = pneg %p122
        %p225 = scmp.lt.s32.totalorder %s21, 1
        %s226 = scalar_select %p225, %s21, 1
        %s227 = scalar_lea.vmem %s3, %s226
        %p228 = pneg %p151
        %p229 = pneg %p148
        %p230 = scmp.lt.s32.totalorder %s21, 1
        %s231 = scalar_select %p230, %s21, 1
        %s232 = scalar_lea.vmem %s4, %s231
        %s233 = smul.u32 2, %s21
        %p234 = scmp.lt.s32.totalorder %s233, 3
        %s235 = scalar_select %p234, %s233, 3
        %p236 = scmp.lt.s32.totalorder %s22, 0
        %s237 = scalar_select %p236, %s22, 0
        %s238 = sadd.s32 %s237, %s235
        %s239 = smul.addr %s238, 8
        %s240 = scalar_lea.vmem %s0, %s239
        %s241 = smul.u32 2, %s21
        %p242 = scmp.lt.s32.totalorder %s21, 1
        %s243 = scalar_select %p242, %s21, 1
        %s244 = scalar_lea.vmem %s2, %s243
        %p245 = scmp.lt.s32.totalorder %s21, 1
        %s246 = scalar_select %p245, %s21, 1
        %s247 = scalar_lea.vmem %s3, %s246
        %p248 = scmp.lt.s32.totalorder %s21, 1
        %s249 = scalar_select %p248, %s21, 1
        %s250 = scalar_lea.vmem %s4, %s249
        %p251 = scmp.eq.s32.totalorder %s22, 0
        // Predicated region
        $region33: #{_sss_loss_impl.1} parent=27 // pred_check
          %p252 = pneg %p251
        $region34: #{_sss_loss_impl.1} parent=27 // pred_check_branch
          %254 = sbr.rel (%p252) target = $region36
        $region35: #{_sss_loss_impl.1} parent=27 // pred_region
          %255 = vst [vmem:[%s244] sm:$0x1] 0.0
          %256 = vst [vmem:[%s247] sm:$0x1] 0.0
          %257 = vst [vmem:[%s250] sm:$0x1] 0.0
        $region36: #{_sss_loss_impl.1} parent=27 // pred_fallthru
          _
        %v258 = vld [vmem:[%s240] sm:$0xff]
        %v259 = vld [vmem:[%s240 + $0x8] sm:$0xff]
        %v260 = vld [vmem:[#allocation2] sm:$0xff]
        %v261 = vld [vmem:[#allocation2 + $0x8] sm:$0xff]
        %v262 = vld [vmem:[#allocation2 + $0x10] sm:$0xff]
        %v263 = vld [vmem:[#allocation2 + $0x18] sm:$0xff]
        %v264 = vld [vmem:[#allocation2 + $0x20] sm:$0xff]
        %v265 = vld [vmem:[#allocation2 + $0x28] sm:$0xff]
        %v266 = vld [vmem:[#allocation2 + $0x30] sm:$0xff]
        %v267 = vld [vmem:[#allocation2 + $0x38] sm:$0xff]
        %v268 = vld [vmem:[#allocation2 + $0x40] sm:$0xff]
        %v269 = vld [vmem:[#allocation2 + $0x48] sm:$0xff]
        %v270 = vld [vmem:[#allocation2 + $0x50] sm:$0xff]
        %v271 = vld [vmem:[#allocation2 + $0x58] sm:$0xff]
        %v272 = vld [vmem:[#allocation2 + $0x60] sm:$0xff]
        %v273 = vld [vmem:[#allocation2 + $0x68] sm:$0xff]
        %v274 = vld [vmem:[#allocation2 + $0x70] sm:$0xff]
        %v275 = vld [vmem:[#allocation2 + $0x78] sm:$0xff]
        %v276 = vld [vmem:[#allocation2 + $0x80] sm:$0xff]
        %v277 = vld [vmem:[#allocation2 + $0x88] sm:$0xff]
        %v278 = vld [vmem:[#allocation2 + $0x90] sm:$0xff]
        %v279 = vld [vmem:[#allocation2 + $0x98] sm:$0xff]
        %v280 = vld [vmem:[#allocation2 + $0xa0] sm:$0xff]
        %v281 = vld [vmem:[#allocation2 + $0xa8] sm:$0xff]
        %v282 = vld [vmem:[#allocation2 + $0xb0] sm:$0xff]
        %v283 = vld [vmem:[#allocation2 + $0xb8] sm:$0xff]
        %v284 = vld [vmem:[#allocation2 + $0xc0] sm:$0xff]
        %v285 = vld [vmem:[#allocation2 + $0xc8] sm:$0xff]
        %v286 = vld [vmem:[#allocation2 + $0xd0] sm:$0xff]
        %v287 = vld [vmem:[#allocation2 + $0xd8] sm:$0xff]
        %v288 = vld [vmem:[#allocation2 + $0xe0] sm:$0xff]
        %v289 = vld [vmem:[#allocation2 + $0xe8] sm:$0xff]
        %v290 = vld [vmem:[#allocation2 + $0xf0] sm:$0xff]
        %v291 = vld [vmem:[#allocation2 + $0xf8] sm:$0xff]
        %292 = vmatprep.subr.mxu0 %v291
        %293 = vmatpush1.msra.mxu0 %v290
        %294 = vmatprep.subr.mxu0 %v289
        %295 = vmatpush1.msra.mxu0 %v288
        %296 = vmatprep.subr.mxu0 %v287
        %297 = vmatpush1.msra.mxu0 %v286
        %298 = vmatprep.subr.mxu0 %v285
        %299 = vmatpush1.msra.mxu0 %v284
        %300 = vmatprep.subr.mxu0 %v283
        %301 = vmatpush1.msra.mxu0 %v282
        %302 = vmatprep.subr.mxu0 %v281
        %303 = vmatpush1.msra.mxu0 %v280
        %304 = vmatprep.subr.mxu0 %v279
        %305 = vmatpush1.msra.mxu0 %v278
        %306 = vmatprep.subr.mxu0 %v277
        %307 = vmatpush1.msra.mxu0 %v276
        %308 = vmatprep.subr.mxu0 %v275
        %309 = vmatpush1.msra.mxu0 %v274
        %310 = vmatprep.subr.mxu0 %v273
        %311 = vmatpush1.msra.mxu0 %v272
        %312 = vmatprep.subr.mxu0 %v271
        %313 = vmatpush1.msra.mxu0 %v270
        %314 = vmatprep.subr.mxu0 %v269
        %315 = vmatpush1.msra.mxu0 %v268
        %316 = vmatprep.subr.mxu0 %v267
        %317 = vmatpush1.msra.mxu0 %v266
        %318 = vmatprep.subr.mxu0 %v265
        %319 = vmatpush1.msra.mxu0 %v264
        %320 = vmatprep.subr.mxu0 %v263
        %321 = vmatpush1.msra.mxu0 %v262
        %322 = vmatprep.subr.mxu0 %v261
        %323 = vmatpush1.msra.mxu0 %v260
        %324 = vmatprep.subr.mxu0 0.0
        %325 = vmatpush2.msra.mxu0 0.0
        %326 = vmatprep.subr.mxu0 0.0
        %327 = vmatpush2.msra.mxu0 0.0
        %328 = vmatprep.subr.mxu0 0.0
        %329 = vmatpush2.msra.mxu0 0.0
        %330 = vmatprep.subr.mxu0 0.0
        %331 = vmatpush2.msra.mxu0 0.0
        %332 = vmatprep.subr.mxu0 0.0
        %333 = vmatpush2.msra.mxu0 0.0
        %334 = vmatprep.subr.mxu0 0.0
        %335 = vmatpush2.msra.mxu0 0.0
        %336 = vmatprep.subr.mxu0 0.0
        %337 = vmatpush2.msra.mxu0 0.0
        %338 = vmatprep.subr.mxu0 0.0
        %339 = vmatpush2.msra.mxu0 0.0
        %340 = vmatprep.subr.mxu0 0.0
        %341 = vmatpush2.msra.mxu0 0.0
        %342 = vmatprep.subr.mxu0 0.0
        %343 = vmatpush2.msra.mxu0 0.0
        %344 = vmatprep.subr.mxu0 0.0
        %345 = vmatpush2.msra.mxu0 0.0
        %346 = vmatprep.subr.mxu0 0.0
        %347 = vmatpush2.msra.mxu0 0.0
        %348 = vmatprep.subr.mxu0 0.0
        %349 = vmatpush2.msra.mxu0 0.0
        %350 = vmatprep.subr.mxu0 0.0
        %351 = vmatpush2.msra.mxu0 0.0
        %352 = vmatprep.subr.mxu0 0.0
        %353 = vmatpush2.msra.mxu0 0.0
        %354 = vmatprep.subr.mxu0 0.0
        %355 = vmatpush2.msra.mxu0 0.0
        %356 = vmatprep.mubr.f32.mxu0 0.0
        %357 = vmatmul.mubr.f32.gmra.mxu0 %v258
        %v358 = vpop.f32.mrf.mxu0
        %v359 = vadd.f32 0.0, %v358
        %v360 = vpop.f32.mrf.mxu0
        %v361 = vadd.f32 0.0, %v360
        %362 = vmatprep.mubr.f32.mxu0 0.0
        %363 = vmatmul.mubr.f32.gmra.mxu0 %v259
        %v364 = vpop.f32.mrf.mxu0
        %v365 = vadd.f32 0.0, %v364
        %v366 = vpop.f32.mrf.mxu0
        %v367 = vadd.f32 0.0, %v366
        %368 = vdwg.mxu0
        %v369 = vmul.f32 %v359, %v359
        %v370 = vmul.f32 %v365, %v365
        %v371 = vmul.f32 %v361, %v361
        %v372 = vmul.f32 %v367, %v367
        %v373 = vadd.f32 %v369, %v371
        %v374 = vadd.f32 %v370, %v372
        %v375 = vrsqrt.pop %v373
        %v376 = vmul.f32 %v373, %v375
        %vm377 = vcmp.eq.f32.partialorder %v373, inf
        %v378 = vsel %vm377, %v373, %v376
        %vm379 = vcmp.eq.f32.partialorder %v373, 0.0
        %v380 = vand.u32 %v373, 2147483648
        %v381 = vsel %vm379, %v380, %v378
        %v382 = vrsqrt.pop %v374
        %v383 = vmul.f32 %v374, %v382
        %vm384 = vcmp.eq.f32.partialorder %v374, inf
        %v385 = vsel %vm384, %v374, %v383
        %vm386 = vcmp.eq.f32.partialorder %v374, 0.0
        %v387 = vand.u32 %v374, 2147483648
        %v388 = vsel %vm386, %v387, %v385
        %v389 = vadd.f32 %v381, 1e-07
        %v390 = vadd.f32 %v388, 1e-07
        %v391 = vlaneseq
        %v392 = vshrl.u32 %v391, 7
        %s393 = smul.u32 %s22, 8
        %v394 = vstv %s393
        %v395 = vadd.s32 %v392, %v394
        %v396 = vlaneseq
        %v397 = vand.u32 %v396, 127
        %vm398 = vcmp.lt.s32.totalorder %v395, 8
        %vm399 = vcmp.lt.s32.totalorder %v397, 15
        %vm400 = vmand %vm398, %vm399
        %v401 = vsub.f32 %v389, %v390
        %v402 = vadd.f32 %v389, %v390
        %v403 = vsel %vm400, %v402, 0.0
        %v404 = vlog2.pop %v389
        %v405 = vmul.f32 %v404, 0.6931472
        %v406 = vlog2.pop %v390
        %v407 = vmul.f32 %v406, 0.6931472
        %v408 = vsub.f32 %v405, %v407
        %v409 = vand.u32 2147483647, %v408
        %v410 = vld [vmem:[%s244] sm:$0x1]
        %v411 = vmul.f32 %v401, %v401
        %v412 = vrot.slane %v411, 4
        %v413 = vadd.f32 %v411, %v412
        %v414 = vrot.slane %v413, 2
        %v415 = vadd.f32 %v413, %v414
        %v416 = vrot.slane %v415, 1
        %v417 = vadd.f32 %v415, %v416
        %v418 = vadd.f32 %v410, %v417
        %419 = vst [vmem:[%s244] sm:$0x1] %v418
        %v420 = vld [vmem:[%s247] sm:$0x1]
        %v421 = vmul.f32 %v403, %v403
        %v422 = vrot.slane %v421, 4
        %v423 = vadd.f32 %v421, %v422
        %v424 = vrot.slane %v423, 2
        %v425 = vadd.f32 %v423, %v424
        %v426 = vrot.slane %v425, 1
        %v427 = vadd.f32 %v425, %v426
        %v428 = vadd.f32 %v420, %v427
        %429 = vst [vmem:[%s247] sm:$0x1] %v428
        %v430 = vld [vmem:[%s250] sm:$0x1]
        %v431 = vrot.slane %v409, 4
        %v432 = vadd.f32 %v409, %v431
        %v433 = vrot.slane %v432, 2
        %v434 = vadd.f32 %v432, %v433
        %v435 = vrot.slane %v434, 1
        %v436 = vadd.f32 %v434, %v435
        %v437 = vadd.f32 %v430, %v436
        %438 = vst [vmem:[%s250] sm:$0x1] %v437
        %p439 = scmp.lt.s32.totalorder %s21, 1
        %s440 = scalar_select %p439, %s21, 1
        %s441 = scalar_lea.vmem %s2, %s440
        %p442 = scmp.lt.s32.totalorder %s21, 1
        %s443 = scalar_select %p442, %s21, 1
        %s444 = scalar_lea.vmem %s3, %s443
        %p445 = scmp.lt.s32.totalorder %s21, 1
        %s446 = scalar_select %p445, %s21, 1
        %s447 = scalar_lea.vmem %s4, %s446
        // Predicated region
        $region37: #{_sss_loss_impl.1} parent=27 // pred_check
          %p448 = pneg %p96
        $region38: #{_sss_loss_impl.1} parent=27 // pred_check_branch
          %450 = sbr.rel (%p448) target = $region40
        $region39: #{_sss_loss_impl.1} parent=27 // pred_region
          _
        $region40: #{_sss_loss_impl.1} parent=27 // pred_fallthru
          _
        // Predicated region
        $region41: #{_sss_loss_impl.1} parent=27 // pred_check
          %p451 = pneg %p122
        $region42: #{_sss_loss_impl.1} parent=27 // pred_check_branch
          %453 = sbr.rel (%p451) target = $region44
        $region43: #{_sss_loss_impl.1} parent=27 // pred_region
          _
        $region44: #{_sss_loss_impl.1} parent=27 // pred_fallthru
          _
        // Predicated region
        $region45: #{_sss_loss_impl.1} parent=27 // pred_check
          %p454 = pneg %p148
        $region46: #{_sss_loss_impl.1} parent=27 // pred_check_branch
          %456 = sbr.rel (%p454) target = $region48
        $region47: #{_sss_loss_impl.1} parent=27 // pred_region
          _
        $region48: #{_sss_loss_impl.1} parent=27 // pred_fallthru
          _
      $region28: #{_sss_loss_impl.1} parent=5 // pred_fallthru
        _
      %p457 = scmp.le.s32.totalorder 2, %s12
      // Predicated region
      $region49: #{_sss_loss_impl.1} parent=5 // pred_check
        %p458 = pneg %p457
      $region50: #{_sss_loss_impl.1} parent=5 // pred_check_branch
        %460 = sbr.rel (%p458) target = $region52
      $region51: #{_sss_loss_impl.1} parent=5 // pred_region
        %s461 = ssub.s32 %s12, 2
        // Predicated region
        $region53: #{_sss_loss_impl.1} parent=51 // pred_check
          %p462 = pneg %p102
        $region54: #{_sss_loss_impl.1} parent=51 // pred_check_branch
          %464 = sbr.rel (%p462) target = $region56
        $region55: #{_sss_loss_impl.1} parent=51 // pred_region
          %p465 = scmp.lt.s32.totalorder %s23, 1
          %s466 = scalar_select %p465, %s23, 1
          %s467 = scalar_lea.vmem %s2, %s466
        $region56: #{_sss_loss_impl.1} parent=51 // pred_fallthru
          _
        // Predicated region
        $region57: #{_sss_loss_impl.1} parent=51 // pred_check
          %p468 = pneg %p128
        $region58: #{_sss_loss_impl.1} parent=51 // pred_check_branch
          %470 = sbr.rel (%p468) target = $region60
        $region59: #{_sss_loss_impl.1} parent=51 // pred_region
          %p471 = scmp.lt.s32.totalorder %s23, 1
          %s472 = scalar_select %p471, %s23, 1
          %s473 = scalar_lea.vmem %s3, %s472
        $region60: #{_sss_loss_impl.1} parent=51 // pred_fallthru
          _
        // Predicated region
        $region61: #{_sss_loss_impl.1} parent=51 // pred_check
          %p474 = pneg %p154
        $region62: #{_sss_loss_impl.1} parent=51 // pred_check_branch
          %476 = sbr.rel (%p474) target = $region64
        $region63: #{_sss_loss_impl.1} parent=51 // pred_region
          %p477 = scmp.lt.s32.totalorder %s23, 1
          %s478 = scalar_select %p477, %s23, 1
          %s479 = scalar_lea.vmem %s4, %s478
        $region64: #{_sss_loss_impl.1} parent=51 // pred_fallthru
          _
      $region52: #{_sss_loss_impl.1} parent=5 // pred_fallthru
        _
    $region6: #{_sss_loss_impl.1} parent=1 // loop_footer
      %s16 = sadd.s32 1, %s12
    $region7: #{_sss_loss_impl.1} parent=1 // loop_footer_branch
      %11 = sbr.rel target = $region3
    $region8: #{_sss_loss_impl.1} parent=1 // loop_exit
      _
    %480 = vsyncpa [#allocation3], 1
    %s481 = scalar_lea.sflag [#allocation3], 1
    %482 = vsyncpa %s481, 1

</llo_original>
